<compile_context>
chip_gen: v6e
topology: v6e:2x2x1
jax: 0.10.0
libtpu: 0.0.40
codegen_flags: <defaults>
</compile_context>

<pallas_src>
import functools

import jax
import jax.numpy as jnp
from jax import lax
from jax.experimental import pallas as pl
from jax.experimental.pallas import tpu as pltpu

_LANE = 128
_SUBLANE = 8


def _round_up(n, m):
    return ((n + m - 1) // m) * m


def _rnn_seq_kernel(x_ref, s0_ref, whh_ref, wxh_ref, bin_ref, wy_ref, by_ref,
                    y_ref, s_out_ref, state_scr):
    """One grid step == one RNN time step; weights stay VMEM-resident."""
    t = pl.program_id(0)

    @pl.when(t == 0)
    def _():
        state_scr[...] = s0_ref[...].astype(jnp.float32)

    x = x_ref[0].astype(jnp.float32)          # (B_pad, IN_pad)
    s = state_scr[...]                        # (B_pad, H_pad), f32

    ax = (jnp.dot(s, whh_ref[...], preferred_element_type=jnp.float32)
          + jnp.dot(x, wxh_ref[...], preferred_element_type=jnp.float32)
          + bin_ref[...])
    new_state = jnp.tanh(ax)
    state_scr[...] = new_state

    yv = jnp.dot(new_state, wy_ref[...],
                 preferred_element_type=jnp.float32) + by_ref[...]
    y_ref[0] = jnp.maximum(yv, 0.0).astype(y_ref.dtype)

    # Final-state output block is revisited (same index every step); it is
    # only written back to HBM once at the end of the grid.
    s_out_ref[...] = new_state.astype(s_out_ref.dtype)


def prepare_params(w_in, b_in, w_y, b_y, in_dim, hidden_dim, out_dim,
                   param_dtype=jnp.float32):
    """One-time host-side prep: split W_in, transpose, zero-pad to TPU tiles.

    PyTorch layout: w_in (H, H+IN) applied to cat((state, x), 1), so columns
    [0:H] multiply state and [H:H+IN] multiply x.  w_y is (OUT, H).
    """
    h_pad = _round_up(hidden_dim, _LANE)
    in_pad = _round_up(in_dim, _LANE)
    out_pad = _round_up(out_dim, _LANE)

    w_hh = w_in[:, :hidden_dim]               # (H, H)
    w_xh = w_in[:, hidden_dim:]               # (H, IN)

    whh_t = jnp.zeros((h_pad, h_pad), param_dtype)
    whh_t = whh_t.at[:hidden_dim, :hidden_dim].set(w_hh.T.astype(param_dtype))
    wxh_t = jnp.zeros((in_pad, h_pad), param_dtype)
    wxh_t = wxh_t.at[:in_dim, :hidden_dim].set(w_xh.T.astype(param_dtype))
    bin_p = jnp.zeros((1, h_pad), param_dtype)
    bin_p = bin_p.at[0, :hidden_dim].set(b_in.astype(param_dtype))
    wy_t = jnp.zeros((h_pad, out_pad), param_dtype)
    wy_t = wy_t.at[:hidden_dim, :out_dim].set(w_y.T.astype(param_dtype))
    by_p = jnp.zeros((1, out_pad), param_dtype)
    by_p = by_p.at[0, :out_dim].set(b_y.astype(param_dtype))

    return {"whh_t": whh_t, "wxh_t": wxh_t, "b_in": bin_p,
            "wy_t": wy_t, "b_y": by_p}


@functools.partial(jax.jit, static_argnames=("out_dim",))
def rnn_forward_seq(xs, state0, params, *, out_dim):
    """Run the whole sequence in one kernel.

    xs: (T, B, IN), state0: (B, H)  ->  (ys (T, B, OUT), final_state (B, H)).
    """
    T, B, in_dim = xs.shape
    hidden = state0.shape[1]

    in_pad = params["wxh_t"].shape[0]
    h_pad = params["wy_t"].shape[0]
    out_pad = params["wy_t"].shape[1]
    b_pad = _round_up(max(B, _SUBLANE), _SUBLANE)

    xs_p = jnp.zeros((T, b_pad, in_pad), xs.dtype).at[:, :B, :in_dim].set(xs)
    s0_p = jnp.zeros((b_pad, h_pad), state0.dtype).at[:B, :hidden].set(state0)

    y_p, s_p = pl.pallas_call(
        _rnn_seq_kernel,
        out_shape=(
            jax.ShapeDtypeStruct((T, b_pad, out_pad), xs.dtype),
            jax.ShapeDtypeStruct((b_pad, h_pad), xs.dtype),
        ),
        grid=(T,),
        in_specs=[
            pl.BlockSpec((1, b_pad, in_pad), lambda t: (t, 0, 0)),   # x_t
            pl.BlockSpec((b_pad, h_pad), lambda t: (0, 0)),          # state0
            pl.BlockSpec((h_pad, h_pad), lambda t: (0, 0)),          # W_hh^T
            pl.BlockSpec((in_pad, h_pad), lambda t: (0, 0)),         # W_xh^T
            pl.BlockSpec((1, h_pad), lambda t: (0, 0)),              # b_in
            pl.BlockSpec((h_pad, out_pad), lambda t: (0, 0)),        # W_y^T
            pl.BlockSpec((1, out_pad), lambda t: (0, 0)),            # b_y
        ],
        out_specs=(
            pl.BlockSpec((1, b_pad, out_pad), lambda t: (t, 0, 0)),  # y_t
            pl.BlockSpec((b_pad, h_pad), lambda t: (0, 0)),          # final state
        ),
        scratch_shapes=[pltpu.VMEM((b_pad, h_pad), jnp.float32)],
        compiler_params=pltpu.CompilerParams(
            dimension_semantics=("arbitrary",)),                     # recurrence
    )(xs_p, s0_p, params["whh_t"], params["wxh_t"], params["b_in"],
      params["wy_t"], params["b_y"])

    ys = y_p[:, :B, :out_dim]
    final_state = s_p[:B, :hidden]
    return ys, final_state


def rnn_forward(x, state, params, *, out_dim):
    """Single-step forward, matching the PyTorch module's forward(x, state)."""
    ys, new_state = rnn_forward_seq(x[None], state, params, out_dim=out_dim)
    return ys[0], new_state


def init_params(key, in_dim, hidden_dim, out_dim, dtype=jnp.float32):
    """nn.Linear-shaped params, uniform +/- 1/sqrt(fan_in)."""
    k1, k2, k3, k4 = jax.random.split(key, 4)
    fan_in1 = hidden_dim + in_dim
    lim1 = 1.0 / jnp.sqrt(fan_in1)
    w_in = jax.random.uniform(k1, (hidden_dim, fan_in1), dtype, -lim1, lim1)
    b_in = jax.random.uniform(k2, (hidden_dim,), dtype, -lim1, lim1)
    lim2 = 1.0 / jnp.sqrt(hidden_dim)
    w_y = jax.random.uniform(k3, (out_dim, hidden_dim), dtype, -lim2, lim2)
    b_y = jax.random.uniform(k4, (out_dim,), dtype, -lim2, lim2)
    return w_in, b_in, w_y, b_y


if __name__ == "__main__":
    in_dim, hidden_dim, out_dim = 16, 32, 8
    batch, seq = 2, 8

    key = jax.random.PRNGKey(0)
    kx, kp = jax.random.split(key)
    xs = jax.random.normal(kx, (seq, batch, in_dim), jnp.float32)
    # PyTorch module's default initial state is zeros.
    state0 = jnp.zeros((batch, hidden_dim), jnp.float32)

    w_in, b_in, w_y, b_y = init_params(kp, in_dim, hidden_dim, out_dim)
    params = prepare_params(w_in, b_in, w_y, b_y, in_dim, hidden_dim, out_dim)

    # Whole sequence in one kernel call (weights + state VMEM-resident).
    ys, final_state = rnn_forward_seq(xs, state0, params, out_dim=out_dim)
    jax.block_until_ready((ys, final_state))

    # Pure-JAX reference: the original per-step math, scanned over time.
    def step(s, x):
        hx = jnp.concatenate([s, x], axis=1)
        ns = jnp.tanh(hx @ w_in.T + b_in)
        y = jnp.maximum(ns @ w_y.T + b_y, 0.0)
        return ns, y

    ref_final, ref_ys = lax.scan(step, state0, xs)
    assert jnp.allclose(ys, ref_ys, atol=1e-4, rtol=1e-4), "sequence y mismatch"
    assert jnp.allclose(final_state, ref_final, atol=1e-4, rtol=1e-4), \
        "final state mismatch"

    # Single-step path (exactly the PyTorch forward(x, state) contract).
    y1, s1 = rnn_forward(xs[0], state0, params, out_dim=out_dim)
    hx = jnp.concatenate([state0, xs[0]], axis=1)
    ref_s1 = jnp.tanh(hx @ w_in.T + b_in)
    ref_y1 = jnp.maximum(ref_s1 @ w_y.T + b_y, 0.0)
    assert jnp.allclose(y1, ref_y1, atol=1e-4, rtol=1e-4), "single-step y mismatch"
    assert jnp.allclose(s1, ref_s1, atol=1e-4, rtol=1e-4), "single-step state mismatch"

    print("KERNEL_OK")
</pallas_src>

<mosaic_0001>
module attributes {stable_mosaic.version = 11 : i64} {
  func.func @_rnn_seq_kernel(%arg0: i32, %arg1: memref<1x8x128xf32, #tpu.memory_space<vmem>>, %arg2: memref<8x128xf32, #tpu.memory_space<vmem>>, %arg3: memref<128x128xf32, #tpu.memory_space<vmem>>, %arg4: memref<128x128xf32, #tpu.memory_space<vmem>>, %arg5: memref<1x128xf32, #tpu.memory_space<vmem>>, %arg6: memref<128x128xf32, #tpu.memory_space<vmem>>, %arg7: memref<1x128xf32, #tpu.memory_space<vmem>>, %arg8: memref<1x8x128xf32, #tpu.memory_space<vmem>>, %arg9: memref<8x128xf32, #tpu.memory_space<vmem>>, %arg10: memref<8x128xf32, #tpu.memory_space<vmem>>) attributes {dimension_semantics = [#tpu.dimension_semantics<arbitrary>], iteration_bounds = array<i64: 8>, scalar_prefetch = 0 : i64, scratch_operands = 1 : i64, tpu.core_type = #tpu.core_type<tc>, window_params = [{transform_indices = @transform_0, window_bounds = array<i64: 1, 8, 128>}, {pipeline_mode = #tpu.pipeline_mode<synchronous>, transform_indices = @transform_1, window_bounds = array<i64: 8, 128>}, {pipeline_mode = #tpu.pipeline_mode<synchronous>, transform_indices = @transform_2, window_bounds = array<i64: 128, 128>}, {pipeline_mode = #tpu.pipeline_mode<synchronous>, transform_indices = @transform_3, window_bounds = array<i64: 128, 128>}, {pipeline_mode = #tpu.pipeline_mode<synchronous>, transform_indices = @transform_4, window_bounds = array<i64: 1, 128>}, {pipeline_mode = #tpu.pipeline_mode<synchronous>, transform_indices = @transform_5, window_bounds = array<i64: 128, 128>}, {pipeline_mode = #tpu.pipeline_mode<synchronous>, transform_indices = @transform_6, window_bounds = array<i64: 1, 128>}, {transform_indices = @transform_7, window_bounds = array<i64: 1, 8, 128>}, {pipeline_mode = #tpu.pipeline_mode<synchronous>, transform_indices = @transform_8, window_bounds = array<i64: 8, 128>}]} {
    %c0_i32 = arith.constant 0 : i32
    %0 = arith.cmpi eq, %arg0, %c0_i32 : i32
    %1 = arith.extui %0 : i1 to i32
    %c0_i32_0 = arith.constant 0 : i32
    %2 = arith.cmpi ne, %1, %c0_i32_0 : i32
    scf.if %2 {
      %c0_25 = arith.constant 0 : index
      %c0_26 = arith.constant 0 : index
      %27 = vector.load %arg2[%c0_25, %c0_26] : memref<8x128xf32, #tpu.memory_space<vmem>>, vector<8x128xf32>
      %c0_27 = arith.constant 0 : index
      %c0_28 = arith.constant 0 : index
      %28 = vector.load %arg10[%c0_27, %c0_28] : memref<8x128xf32, #tpu.memory_space<vmem>>, vector<8x128xf32>
      tpu.vector_store %arg10[%c0_27, %c0_28], %27 {strides = array<i32>} : memref<8x128xf32, #tpu.memory_space<vmem>>, vector<8x128xf32>,
    } else {
    }
    %c0 = arith.constant 0 : index
    %c0_1 = arith.constant 0 : index
    %c0_2 = arith.constant 0 : index
    %3 = vector.load %arg1[%c0, %c0_1, %c0_2] : memref<1x8x128xf32, #tpu.memory_space<vmem>>, vector<1x8x128xf32>
    %4 = vector.shape_cast %3 : vector<1x8x128xf32> to vector<8x128xf32>
    %c0_3 = arith.constant 0 : index
    %c0_4 = arith.constant 0 : index
    %5 = vector.load %arg10[%c0_3, %c0_4] : memref<8x128xf32, #tpu.memory_space<vmem>>, vector<8x128xf32>
    %c0_5 = arith.constant 0 : index
    %c0_6 = arith.constant 0 : index
    %6 = vector.load %arg3[%c0_5, %c0_6] : memref<128x128xf32, #tpu.memory_space<vmem>>, vector<128x128xf32>
    %cst = arith.constant dense<0.000000e+00> : vector<8x128xf32>
    %7 = tpu.matmul %5, %6, %cst {dimension_numbers = #tpu.dot_dimension_numbers<[1], [0], [0], [1], [0, 0, 1, 1], [], []>} : vector<8x128xf32>, vector<128x128xf32>, vector<8x128xf32> -> vector<8x128xf32>
    %c0_7 = arith.constant 0 : index
    %c0_8 = arith.constant 0 : index
    %8 = vector.load %arg4[%c0_7, %c0_8] : memref<128x128xf32, #tpu.memory_space<vmem>>, vector<128x128xf32>
    %cst_9 = arith.constant dense<0.000000e+00> : vector<8x128xf32>
    %9 = tpu.matmul %4, %8, %cst_9 {dimension_numbers = #tpu.dot_dimension_numbers<[1], [0], [0], [1], [0, 0, 1, 1], [], []>} : vector<8x128xf32>, vector<128x128xf32>, vector<8x128xf32> -> vector<8x128xf32>
    %10 = arith.addf %7, %9 : vector<8x128xf32>
    %c0_10 = arith.constant 0 : index
    %c0_11 = arith.constant 0 : index
    %11 = vector.load %arg5[%c0_10, %c0_11] : memref<1x128xf32, #tpu.memory_space<vmem>>, vector<1x128xf32>
    %12 = vector.broadcast %11 : vector<1x128xf32> to vector<8x128xf32>
    %13 = arith.addf %10, %12 : vector<8x128xf32>
    %14 = math.tanh %13 : vector<8x128xf32>
    %c0_12 = arith.constant 0 : index
    %c0_13 = arith.constant 0 : index
    %15 = vector.load %arg10[%c0_12, %c0_13] : memref<8x128xf32, #tpu.memory_space<vmem>>, vector<8x128xf32>
    tpu.vector_store %arg10[%c0_12, %c0_13], %14 {strides = array<i32>} : memref<8x128xf32, #tpu.memory_space<vmem>>, vector<8x128xf32>,
    %c0_14 = arith.constant 0 : index
    %c0_15 = arith.constant 0 : index
    %16 = vector.load %arg6[%c0_14, %c0_15] : memref<128x128xf32, #tpu.memory_space<vmem>>, vector<128x128xf32>
    %cst_16 = arith.constant dense<0.000000e+00> : vector<8x128xf32>
    %17 = tpu.matmul %14, %16, %cst_16 {dimension_numbers = #tpu.dot_dimension_numbers<[1], [0], [0], [1], [0, 0, 1, 1], [], []>} : vector<8x128xf32>, vector<128x128xf32>, vector<8x128xf32> -> vector<8x128xf32>
    %c0_17 = arith.constant 0 : index
    %c0_18 = arith.constant 0 : index
    %18 = vector.load %arg7[%c0_17, %c0_18] : memref<1x128xf32, #tpu.memory_space<vmem>>, vector<1x128xf32>
    %19 = vector.broadcast %18 : vector<1x128xf32> to vector<8x128xf32>
    %20 = arith.addf %17, %19 : vector<8x128xf32>
    %cst_19 = arith.constant 0.000000e+00 : f32
    %21 = vector.broadcast %cst_19 : f32 to vector<8x128xf32>
    %22 = arith.maximumf %20, %21 : vector<8x128xf32>
    %c0_20 = arith.constant 0 : index
    %c0_21 = arith.constant 0 : index
    %c0_22 = arith.constant 0 : index
    %23 = vector.load %arg8[%c0_20, %c0_21, %c0_22] : memref<1x8x128xf32, #tpu.memory_space<vmem>>, vector<1x8x128xf32>
    %24 = vector.shape_cast %23 : vector<1x8x128xf32> to vector<8x128xf32>
    %25 = vector.shape_cast %22 : vector<8x128xf32> to vector<1x8x128xf32>
    tpu.vector_store %arg8[%c0_20, %c0_21, %c0_22], %25 {strides = array<i32>} : memref<1x8x128xf32, #tpu.memory_space<vmem>>, vector<1x8x128xf32>,
    %c0_23 = arith.constant 0 : index
    %c0_24 = arith.constant 0 : index
    %26 = vector.load %arg9[%c0_23, %c0_24] : memref<8x128xf32, #tpu.memory_space<vmem>>, vector<8x128xf32>
    tpu.vector_store %arg9[%c0_23, %c0_24], %14 {strides = array<i32>} : memref<8x128xf32, #tpu.memory_space<vmem>>, vector<8x128xf32>,
    return
  }
  func.func @transform_0(%arg0: i32) -> (i32, i32, i32) {
    %c0_i32 = arith.constant 0 : i32
    %c0_i32_0 = arith.constant 0 : i32
    %c0_i32_1 = arith.constant 0 : i32
    return %arg0, %c0_i32, %c0_i32_0 : i32, i32, i32
  }
  func.func @transform_1(%arg0: i32) -> (i32, i32) {
    %c0_i32 = arith.constant 0 : i32
    %c0_i32_0 = arith.constant 0 : i32
    %c0_i32_1 = arith.constant 0 : i32
    return %c0_i32, %c0_i32_0 : i32, i32
  }
  func.func @transform_2(%arg0: i32) -> (i32, i32) {
    %c0_i32 = arith.constant 0 : i32
    %c0_i32_0 = arith.constant 0 : i32
    %c0_i32_1 = arith.constant 0 : i32
    return %c0_i32, %c0_i32_0 : i32, i32
  }
  func.func @transform_3(%arg0: i32) -> (i32, i32) {
    %c0_i32 = arith.constant 0 : i32
    %c0_i32_0 = arith.constant 0 : i32
    %c0_i32_1 = arith.constant 0 : i32
    return %c0_i32, %c0_i32_0 : i32, i32
  }
  func.func @transform_4(%arg0: i32) -> (i32, i32) {
    %c0_i32 = arith.constant 0 : i32
    %c0_i32_0 = arith.constant 0 : i32
    %c0_i32_1 = arith.constant 0 : i32
    return %c0_i32, %c0_i32_0 : i32, i32
  }
  func.func @transform_5(%arg0: i32) -> (i32, i32) {
    %c0_i32 = arith.constant 0 : i32
    %c0_i32_0 = arith.constant 0 : i32
    %c0_i32_1 = arith.constant 0 : i32
    return %c0_i32, %c0_i32_0 : i32, i32
  }
  func.func @transform_6(%arg0: i32) -> (i32, i32) {
    %c0_i32 = arith.constant 0 : i32
    %c0_i32_0 = arith.constant 0 : i32
    %c0_i32_1 = arith.constant 0 : i32
    return %c0_i32, %c0_i32_0 : i32, i32
  }
  func.func @transform_7(%arg0: i32) -> (i32, i32, i32) {
    %c0_i32 = arith.constant 0 : i32
    %c0_i32_0 = arith.constant 0 : i32
    %c0_i32_1 = arith.constant 0 : i32
    return %arg0, %c0_i32, %c0_i32_0 : i32, i32, i32
  }
  func.func @transform_8(%arg0: i32) -> (i32, i32) {
    %c0_i32 = arith.constant 0 : i32
    %c0_i32_0 = arith.constant 0 : i32
    %c0_i32_1 = arith.constant 0 : i32
    return %c0_i32, %c0_i32_0 : i32, i32
  }
}

</mosaic_0001>

<llo_original>
// kernel: rnn_forward_seq.1
$region0: #{rnn_forward_seq.1}
  #allocation0 [shape = 'u32[]', space=smem, size = 0x4, offset = 0x4, fixed_abs, tag = 'smem constant byte address 0x4 - core index']
  #allocation1 [shape = 'u32[144,128]{1,0:T(1,128)}', space=vmem, size = 0x12000, scoped, tag = 'internal scratch']
  #allocation2 [shape = 'f32[8,128]{1,0:T(8,128)}', space=vmem, size = 0x1000, scoped, tag = 'scratch operand']
  %s0 = inlined_call_operand.vmem [shape: f32[8,8,128], index: 0, kind: input, shape index: {}]
  %s1 = inlined_call_operand.vmem [shape: f32[8,128], index: 1, kind: input, shape index: {}]
  %s2 = inlined_call_operand.hbm [shape: f32[128,128], index: 2, kind: input, shape index: {}]
  %s3 = inlined_call_operand.hbm [shape: f32[128,128], index: 3, kind: input, shape index: {}]
  %s4 = inlined_call_operand.vmem [shape: f32[1,128], index: 4, kind: input, shape index: {}]
  %s5 = inlined_call_operand.hbm [shape: f32[128,128], index: 5, kind: input, shape index: {}]
  %s6 = inlined_call_operand.vmem [shape: f32[1,128], index: 6, kind: input, shape index: {}]
  %s7 = inlined_call_operand.vmem [shape: f32[8,8,128], index: 7, kind: output, shape index: {0}]
  %s8 = inlined_call_operand.vmem [shape: f32[8,128], index: 8, kind: output, shape index: {1}]
  %9 = xla_tuple %s7, %s8
  %s10 = sld [smem:[#allocation0]]
  $region85: #{rnn_forward_seq.1} parent=0
    _
  %s12 = ssub.s32 1, %s10
  %s13 = scalar_select 0, %s12, %s10
  $region1: #{rnn_forward_seq.1} parent=0
    #allocation3 [shape = 'u8[65536]{0}', space=vmem, size = 0x10000, scoped, tag = 'input window, operand 2, single buffered']
    #allocation4 [shape = 's32[2]{0}', space=sflag, size = 0x8, scoped, tag = 'scoped memory for rnn_forward_seq.1']
    #allocation5 [shape = 'u8[65536]{0}', space=vmem, size = 0x10000, scoped, tag = 'input window, operand 3, single buffered']
    #allocation6 [shape = 's32[1]{0}', space=sflag, size = 0x4, scoped, tag = 'scoped memory for rnn_forward_seq.1']
    #allocation7 [shape = 'u8[65536]{0}', space=vmem, size = 0x10000, scoped, tag = 'input window, operand 5, single buffered']
    %14 = vsyncpa [#allocation4], 0
    %15 = vsyncpa [#allocation6], 0
    loop: start=0, step=1, limit=10
    $region2: #{rnn_forward_seq.1} parent=1 // loop_pre_header
      _
    $region3: #{rnn_forward_seq.1} parent=1 // loop_header
      %s17 = sphi 0, %s21
      %p18 = scmp.ge.s32.totalorder %s17, 10
      %s27 = sphi 0, %s29
      %s30 = sphi 0, %s27
      %s31 = sphi 0, %s30
      %s47 = sphi 0, %s31
      %s51 = sphi 0, %s51
      %s53 = sphi 0, %s51
      %s54 = sphi 0, %s53
      %s68 = sphi 0, %s54
      %s72 = sphi 0, %s72
      %s74 = sphi 0, %s72
      %s75 = sphi 0, %s74
      %s89 = sphi 0, %s75
      %s93 = sphi 0, %s93
      %s95 = sphi 0, %s93
      %s96 = sphi 0, %s95
      %s110 = sphi 0, %s96
      %s114 = sphi 0, %s114
      %s116 = sphi 0, %s114
      %s117 = sphi 0, %s116
      %s131 = sphi 0, %s117
      %s135 = sphi 0, %s135
      %s137 = sphi 0, %s135
      %s138 = sphi 0, %s137
      %s152 = sphi 0, %s138
      %s156 = sphi 0, %s156
      %s158 = sphi 0, %s156
      %s159 = sphi 0, %s158
      %s173 = sphi 0, %s159
      %s179 = sphi 0, %s181
      %s182 = sphi 0, %s179
      %s183 = sphi 0, %s182
      %s199 = sphi 0, %s183
      %s203 = sphi 0, %s203
      %s205 = sphi 0, %s203
      %s206 = sphi 0, %s205
      %s220 = sphi 0, %s206
    $region4: #{rnn_forward_seq.1} parent=1 // loop_header_branch
      %20 = sbr.rel (%p18) target = $region8
    $region5: #{rnn_forward_seq.1} parent=1 // loop_body
      %s22 = ssub.s32 %s17, 1
      %s23 = ssub.s32 %s17, 2
      %s24 = sadd.s32 %s17, 1
      %s25 = ssub.s32 %s17, %s24
      %p26 = scmp.eq.s32.totalorder %s25, 0
      %s28 = sadd.s32 %s27, 1
      %s29 = scalar_select %p26, %s27, %s28
      %p32 = pneg %p26
      %p33 = scmp.eq.s32.totalorder %s17, 7
      %p34 = por %p32, %p33
      %p35 = scmp.ne.s32.totalorder %s27, %s30
      %p36 = scmp.eq.s32.totalorder %s17, 0
      %p37 = por %p35, %p36
      %p38 = scmp.ne.s32.totalorder %s27, %s30
      %p39 = scmp.eq.s32.totalorder %s22, 7
      %p40 = por %p38, %p39
      %p41 = scmp.ne.s32.totalorder %s30, %s31
      %p42 = scmp.eq.s32.totalorder %s22, 0
      %p43 = por %p41, %p42
      %p44 = scmp.ne.s32.totalorder %s30, %s31
      %p45 = scmp.eq.s32.totalorder %s23, 7
      %p46 = por %p44, %p45
      %p48 = scmp.ne.s32.totalorder %s31, %s47
      %p49 = scmp.eq.s32.totalorder %s23, 0
      %p50 = por %p48, %p49
      %s52 = sadd.s32 %s51, 1
      %p55 = scmp.eq.s32.totalorder %s17, 7
      %p56 = scmp.ne.s32.totalorder %s51, %s53
      %p57 = scmp.eq.s32.totalorder %s17, 0
      %p58 = por %p56, %p57
      %p59 = scmp.ne.s32.totalorder %s51, %s53
      %p60 = scmp.eq.s32.totalorder %s22, 7
      %p61 = por %p59, %p60
      %p62 = scmp.ne.s32.totalorder %s53, %s54
      %p63 = scmp.eq.s32.totalorder %s22, 0
      %p64 = por %p62, %p63
      %p65 = scmp.ne.s32.totalorder %s53, %s54
      %p66 = scmp.eq.s32.totalorder %s23, 7
      %p67 = por %p65, %p66
      %p69 = scmp.ne.s32.totalorder %s54, %s68
      %p70 = scmp.eq.s32.totalorder %s23, 0
      %p71 = por %p69, %p70
      %s73 = sadd.s32 %s72, 1
      %p76 = scmp.eq.s32.totalorder %s17, 7
      %p77 = scmp.ne.s32.totalorder %s72, %s74
      %p78 = scmp.eq.s32.totalorder %s17, 0
      %p79 = por %p77, %p78
      %p80 = scmp.ne.s32.totalorder %s72, %s74
      %p81 = scmp.eq.s32.totalorder %s22, 7
      %p82 = por %p80, %p81
      %p83 = scmp.ne.s32.totalorder %s74, %s75
      %p84 = scmp.eq.s32.totalorder %s22, 0
      %p85 = por %p83, %p84
      %p86 = scmp.ne.s32.totalorder %s74, %s75
      %p87 = scmp.eq.s32.totalorder %s23, 7
      %p88 = por %p86, %p87
      %p90 = scmp.ne.s32.totalorder %s75, %s89
      %p91 = scmp.eq.s32.totalorder %s23, 0
      %p92 = por %p90, %p91
      %s94 = sadd.s32 %s93, 1
      %p97 = scmp.eq.s32.totalorder %s17, 7
      %p98 = scmp.ne.s32.totalorder %s93, %s95
      %p99 = scmp.eq.s32.totalorder %s17, 0
      %p100 = por %p98, %p99
      %p101 = scmp.ne.s32.totalorder %s93, %s95
      %p102 = scmp.eq.s32.totalorder %s22, 7
      %p103 = por %p101, %p102
      %p104 = scmp.ne.s32.totalorder %s95, %s96
      %p105 = scmp.eq.s32.totalorder %s22, 0
      %p106 = por %p104, %p105
      %p107 = scmp.ne.s32.totalorder %s95, %s96
      %p108 = scmp.eq.s32.totalorder %s23, 7
      %p109 = por %p107, %p108
      %p111 = scmp.ne.s32.totalorder %s96, %s110
      %p112 = scmp.eq.s32.totalorder %s23, 0
      %p113 = por %p111, %p112
      %s115 = sadd.s32 %s114, 1
      %p118 = scmp.eq.s32.totalorder %s17, 7
      %p119 = scmp.ne.s32.totalorder %s114, %s116
      %p120 = scmp.eq.s32.totalorder %s17, 0
      %p121 = por %p119, %p120
      %p122 = scmp.ne.s32.totalorder %s114, %s116
      %p123 = scmp.eq.s32.totalorder %s22, 7
      %p124 = por %p122, %p123
      %p125 = scmp.ne.s32.totalorder %s116, %s117
      %p126 = scmp.eq.s32.totalorder %s22, 0
      %p127 = por %p125, %p126
      %p128 = scmp.ne.s32.totalorder %s116, %s117
      %p129 = scmp.eq.s32.totalorder %s23, 7
      %p130 = por %p128, %p129
      %p132 = scmp.ne.s32.totalorder %s117, %s131
      %p133 = scmp.eq.s32.totalorder %s23, 0
      %p134 = por %p132, %p133
      %s136 = sadd.s32 %s135, 1
      %p139 = scmp.eq.s32.totalorder %s17, 7
      %p140 = scmp.ne.s32.totalorder %s135, %s137
      %p141 = scmp.eq.s32.totalorder %s17, 0
      %p142 = por %p140, %p141
      %p143 = scmp.ne.s32.totalorder %s135, %s137
      %p144 = scmp.eq.s32.totalorder %s22, 7
      %p145 = por %p143, %p144
      %p146 = scmp.ne.s32.totalorder %s137, %s138
      %p147 = scmp.eq.s32.totalorder %s22, 0
      %p148 = por %p146, %p147
      %p149 = scmp.ne.s32.totalorder %s137, %s138
      %p150 = scmp.eq.s32.totalorder %s23, 7
      %p151 = por %p149, %p150
      %p153 = scmp.ne.s32.totalorder %s138, %s152
      %p154 = scmp.eq.s32.totalorder %s23, 0
      %p155 = por %p153, %p154
      %s157 = sadd.s32 %s156, 1
      %p160 = scmp.eq.s32.totalorder %s17, 7
      %p161 = scmp.ne.s32.totalorder %s156, %s158
      %p162 = scmp.eq.s32.totalorder %s17, 0
      %p163 = por %p161, %p162
      %p164 = scmp.ne.s32.totalorder %s156, %s158
      %p165 = scmp.eq.s32.totalorder %s22, 7
      %p166 = por %p164, %p165
      %p167 = scmp.ne.s32.totalorder %s158, %s159
      %p168 = scmp.eq.s32.totalorder %s22, 0
      %p169 = por %p167, %p168
      %p170 = scmp.ne.s32.totalorder %s158, %s159
      %p171 = scmp.eq.s32.totalorder %s23, 7
      %p172 = por %p170, %p171
      %p174 = scmp.ne.s32.totalorder %s159, %s173
      %p175 = scmp.eq.s32.totalorder %s23, 0
      %p176 = por %p174, %p175
      %s177 = ssub.s32 %s17, %s24
      %p178 = scmp.eq.s32.totalorder %s177, 0
      %s180 = sadd.s32 %s179, 1
      %s181 = scalar_select %p178, %s179, %s180
      %p184 = pneg %p178
      %p185 = scmp.eq.s32.totalorder %s17, 7
      %p186 = por %p184, %p185
      %p187 = scmp.ne.s32.totalorder %s179, %s182
      %p188 = scmp.eq.s32.totalorder %s17, 0
      %p189 = por %p187, %p188
      %p190 = scmp.ne.s32.totalorder %s179, %s182
      %p191 = scmp.eq.s32.totalorder %s22, 7
      %p192 = por %p190, %p191
      %p193 = scmp.ne.s32.totalorder %s182, %s183
      %p194 = scmp.eq.s32.totalorder %s22, 0
      %p195 = por %p193, %p194
      %p196 = scmp.ne.s32.totalorder %s182, %s183
      %p197 = scmp.eq.s32.totalorder %s23, 7
      %p198 = por %p196, %p197
      %p200 = scmp.ne.s32.totalorder %s183, %s199
      %p201 = scmp.eq.s32.totalorder %s23, 0
      %p202 = por %p200, %p201
      %s204 = sadd.s32 %s203, 1
      %p207 = scmp.eq.s32.totalorder %s17, 7
      %p208 = scmp.ne.s32.totalorder %s203, %s205
      %p209 = scmp.eq.s32.totalorder %s17, 0
      %p210 = por %p208, %p209
      %p211 = scmp.ne.s32.totalorder %s203, %s205
      %p212 = scmp.eq.s32.totalorder %s22, 7
      %p213 = por %p211, %p212
      %p214 = scmp.ne.s32.totalorder %s205, %s206
      %p215 = scmp.eq.s32.totalorder %s22, 0
      %p216 = por %p214, %p215
      %p217 = scmp.ne.s32.totalorder %s205, %s206
      %p218 = scmp.eq.s32.totalorder %s23, 7
      %p219 = por %p217, %p218
      %p221 = scmp.ne.s32.totalorder %s206, %s220
      %p222 = scmp.eq.s32.totalorder %s23, 0
      %p223 = por %p221, %p222
      %p224 = scmp.le.s32.totalorder 1, %s17
      %p225 = scmp.lt.s32.totalorder %s17, 9
      %p226 = pnand %p224, %p225
      %p227 = pneg %p226
      // Predicated region
      $region9: #{rnn_forward_seq.1} parent=5 // pred_check
        _
      $region10: #{rnn_forward_seq.1} parent=5 // pred_check_branch
        %229 = sbr.rel (%p226) target = $region12
      $region11: #{rnn_forward_seq.1} parent=5 // pred_region
        %s230 = ssub.s32 %s17, 1
        // Predicated region
        $region13: #{rnn_forward_seq.1} parent=11 // pred_check
          %p231 = pneg %p64
        $region14: #{rnn_forward_seq.1} parent=11 // pred_check_branch
          %233 = sbr.rel (%p231) target = $region16
        $region15: #{rnn_forward_seq.1} parent=11 // pred_region
          _
        $region16: #{rnn_forward_seq.1} parent=11 // pred_fallthru
          _
        // Predicated region
        $region17: #{rnn_forward_seq.1} parent=11 // pred_check
          %p234 = pneg %p85
        $region18: #{rnn_forward_seq.1} parent=11 // pred_check_branch
          %236 = sbr.rel (%p234) target = $region20
        $region19: #{rnn_forward_seq.1} parent=11 // pred_region
          %s238 = ssub.s32 2048, 2048
          %239 = vsyncadd [#allocation4], %s238
          %s240 = sshll.u32 [#allocation3], 4
          %s241 = int_to_ptr.vmem [resolvable:$true] %s240
          %246 = dma.hbm_to_vmem [thread:$0]  %s2, 2048, %s241, [#allocation4], 128, 128, 8
        $region20: #{rnn_forward_seq.1} parent=11 // pred_fallthru
          _
        // Predicated region
        $region21: #{rnn_forward_seq.1} parent=11 // pred_check
          %p247 = pneg %p106
        $region22: #{rnn_forward_seq.1} parent=11 // pred_check_branch
          %249 = sbr.rel (%p247) target = $region24
        $region23: #{rnn_forward_seq.1} parent=11 // pred_region
          %s251 = ssub.s32 2048, 2048
          %252 = vsyncadd [#allocation6], %s251
          %s253 = sshll.u32 [#allocation5], 4
          %s254 = int_to_ptr.vmem [resolvable:$true] %s253
          %259 = dma.hbm_to_vmem [thread:$0]  %s3, 2048, %s254, [#allocation6], 128, 128, 8
        $region24: #{rnn_forward_seq.1} parent=11 // pred_fallthru
          _
        // Predicated region
        $region25: #{rnn_forward_seq.1} parent=11 // pred_check
          %p260 = pneg %p127
        $region26: #{rnn_forward_seq.1} parent=11 // pred_check_branch
          %262 = sbr.rel (%p260) target = $region28
        $region27: #{rnn_forward_seq.1} parent=11 // pred_region
          _
        $region28: #{rnn_forward_seq.1} parent=11 // pred_fallthru
          _
        // Predicated region
        $region29: #{rnn_forward_seq.1} parent=11 // pred_check
          %p263 = pneg %p148
        $region30: #{rnn_forward_seq.1} parent=11 // pred_check_branch
          %265 = sbr.rel (%p263) target = $region32
        $region31: #{rnn_forward_seq.1} parent=11 // pred_region
          %s267 = ssub.s32 2048, 2048
          %268 = vsyncadd [#allocation6], %s267
          %s269 = sshll.u32 [#allocation7], 4
          %s270 = int_to_ptr.vmem [resolvable:$true] %s269
          %275 = dma.hbm_to_vmem [thread:$0]  %s5, 2048, %s270, [#allocation6], 128, 128, 8
        $region32: #{rnn_forward_seq.1} parent=11 // pred_fallthru
          _
        // Predicated region
        $region33: #{rnn_forward_seq.1} parent=11 // pred_check
          %p276 = pneg %p169
        $region34: #{rnn_forward_seq.1} parent=11 // pred_check_branch
          %278 = sbr.rel (%p276) target = $region36
        $region35: #{rnn_forward_seq.1} parent=11 // pred_region
          _
        $region36: #{rnn_forward_seq.1} parent=11 // pred_fallthru
          _
      $region12: #{rnn_forward_seq.1} parent=5 // pred_fallthru
        _
      %p279 = scmp.lt.s32.totalorder %s17, 8
      // Predicated region
      $region37: #{rnn_forward_seq.1} parent=5 // pred_check
        %p280 = pneg %p279
      $region38: #{rnn_forward_seq.1} parent=5 // pred_check_branch
        %282 = sbr.rel (%p280) target = $region40
      $region39: #{rnn_forward_seq.1} parent=5 // pred_region
        // Predicated region
        $region41: #{rnn_forward_seq.1} parent=39 // pred_check
          %p283 = pneg %p37
        $region42: #{rnn_forward_seq.1} parent=39 // pred_check_branch
          %285 = sbr.rel (%p283) target = $region44
        $region43: #{rnn_forward_seq.1} parent=39 // pred_region
          %p286 = scmp.lt.s32.totalorder %s17, 7
          %s287 = scalar_select %p286, %s17, 7
          %s288 = smul.addr %s287, 8
          %s289 = scalar_lea.vmem %s0, %s288
        $region44: #{rnn_forward_seq.1} parent=39 // pred_fallthru
          _
      $region40: #{rnn_forward_seq.1} parent=5 // pred_fallthru
        _
      %p290 = scmp.le.s32.totalorder 1, %s17
      %p291 = scmp.lt.s32.totalorder %s17, 9
      %p292 = pnand %p290, %p291
      %p293 = pneg %p292
      // Predicated region
      $region45: #{rnn_forward_seq.1} parent=5 // pred_check
        _
      $region46: #{rnn_forward_seq.1} parent=5 // pred_check_branch
        %295 = sbr.rel (%p292) target = $region48
      $region47: #{rnn_forward_seq.1} parent=5 // pred_region
        %s296 = ssub.s32 %s17, 1
        // Predicated region
        $region49: #{rnn_forward_seq.1} parent=47 // pred_check
          %p297 = pneg %p85
        $region50: #{rnn_forward_seq.1} parent=47 // pred_check_branch
          %299 = sbr.rel (%p297) target = $region52
        $region51: #{rnn_forward_seq.1} parent=47 // pred_region
          %300 = dma.done [#allocation4], 2048
        $region52: #{rnn_forward_seq.1} parent=47 // pred_fallthru
          _
        // Predicated region
        $region53: #{rnn_forward_seq.1} parent=47 // pred_check
          %p301 = pneg %p106
        $region54: #{rnn_forward_seq.1} parent=47 // pred_check_branch
          %303 = sbr.rel (%p301) target = $region56
        $region55: #{rnn_forward_seq.1} parent=47 // pred_region
          %304 = dma.done [#allocation6], 2048
        $region56: #{rnn_forward_seq.1} parent=47 // pred_fallthru
          _
        // Predicated region
        $region57: #{rnn_forward_seq.1} parent=47 // pred_check
          %p305 = pneg %p148
        $region58: #{rnn_forward_seq.1} parent=47 // pred_check_branch
          %307 = sbr.rel (%p305) target = $region60
        $region59: #{rnn_forward_seq.1} parent=47 // pred_region
          %308 = dma.done [#allocation6], 2048
        $region60: #{rnn_forward_seq.1} parent=47 // pred_fallthru
          _
        %p309 = scmp.lt.s32.totalorder %s22, 7
        %s310 = scalar_select %p309, %s22, 7
        %s311 = smul.addr %s310, 8
        %s312 = scalar_lea.vmem %s0, %s311
        %p313 = pneg %p43
        %p314 = pneg %p40
        %p315 = pneg %p64
        %p316 = pneg %p61
        %p317 = pneg %p85
        %p318 = pneg %p82
        %p319 = pneg %p106
        %p320 = pneg %p103
        %p321 = pneg %p127
        %p322 = pneg %p124
        %p323 = pneg %p148
        %p324 = pneg %p145
        %p325 = pneg %p169
        %p326 = pneg %p166
        %p327 = pneg %p195
        %p328 = pneg %p192
        %p329 = scmp.lt.s32.totalorder %s22, 7
        %s330 = scalar_select %p329, %s22, 7
        %s331 = smul.addr %s330, 8
        %s332 = scalar_lea.vmem %s7, %s331
        %p333 = pneg %p216
        %p334 = pneg %p213
        %p335 = scmp.lt.s32.totalorder %s22, 7
        %s336 = scalar_select %p335, %s22, 7
        %s337 = smul.addr %s336, 8
        %s338 = scalar_lea.vmem %s0, %s337
        %p339 = scmp.lt.s32.totalorder %s22, 7
        %s340 = scalar_select %p339, %s22, 7
        %s341 = smul.addr %s340, 8
        %s342 = scalar_lea.vmem %s7, %s341
        %p343 = scmp.eq.s32.totalorder %s22, 0
        // Predicated region
        $region61: #{rnn_forward_seq.1} parent=47 // pred_check
          %p344 = pneg %p343
        $region62: #{rnn_forward_seq.1} parent=47 // pred_check_branch
          %346 = sbr.rel (%p344) target = $region64
        $region63: #{rnn_forward_seq.1} parent=47 // pred_region
          %v347 = vld [vmem:[%s1] sm:$0xff]
          %348 = vst [vmem:[#allocation2] sm:$0xff] %v347
        $region64: #{rnn_forward_seq.1} parent=47 // pred_fallthru
          _
        %v349 = vld [vmem:[%s338] sm:$0xff]
        %v350 = vld [vmem:[#allocation2] sm:$0xff]
        %v351 = vld [vmem:[#allocation3] sm:$0xff]
        %v352 = vld [vmem:[#allocation3 + $0x8] sm:$0xff]
        %v353 = vld [vmem:[#allocation3 + $0x10] sm:$0xff]
        %v354 = vld [vmem:[#allocation3 + $0x18] sm:$0xff]
        %v355 = vld [vmem:[#allocation3 + $0x20] sm:$0xff]
        %v356 = vld [vmem:[#allocation3 + $0x28] sm:$0xff]
        %v357 = vld [vmem:[#allocation3 + $0x30] sm:$0xff]
        %v358 = vld [vmem:[#allocation3 + $0x38] sm:$0xff]
        %v359 = vld [vmem:[#allocation3 + $0x40] sm:$0xff]
        %v360 = vld [vmem:[#allocation3 + $0x48] sm:$0xff]
        %v361 = vld [vmem:[#allocation3 + $0x50] sm:$0xff]
        %v362 = vld [vmem:[#allocation3 + $0x58] sm:$0xff]
        %v363 = vld [vmem:[#allocation3 + $0x60] sm:$0xff]
        %v364 = vld [vmem:[#allocation3 + $0x68] sm:$0xff]
        %v365 = vld [vmem:[#allocation3 + $0x70] sm:$0xff]
        %v366 = vld [vmem:[#allocation3 + $0x78] sm:$0xff]
        %v367 = vld [vmem:[#allocation5] sm:$0xff]
        %v368 = vld [vmem:[#allocation5 + $0x8] sm:$0xff]
        %v369 = vld [vmem:[#allocation5 + $0x10] sm:$0xff]
        %v370 = vld [vmem:[#allocation5 + $0x18] sm:$0xff]
        %v371 = vld [vmem:[#allocation5 + $0x20] sm:$0xff]
        %v372 = vld [vmem:[#allocation5 + $0x28] sm:$0xff]
        %v373 = vld [vmem:[#allocation5 + $0x30] sm:$0xff]
        %v374 = vld [vmem:[#allocation5 + $0x38] sm:$0xff]
        %v375 = vld [vmem:[#allocation5 + $0x40] sm:$0xff]
        %v376 = vld [vmem:[#allocation5 + $0x48] sm:$0xff]
        %v377 = vld [vmem:[#allocation5 + $0x50] sm:$0xff]
        %v378 = vld [vmem:[#allocation5 + $0x58] sm:$0xff]
        %v379 = vld [vmem:[#allocation5 + $0x60] sm:$0xff]
        %v380 = vld [vmem:[#allocation5 + $0x68] sm:$0xff]
        %v381 = vld [vmem:[#allocation5 + $0x70] sm:$0xff]
        %v382 = vld [vmem:[#allocation5 + $0x78] sm:$0xff]
        %383 = vmatprep.subr.mxu0 0.0
        %384 = vmatpush1.msra.mxu0 %v382
        %385 = vmatprep.subr.mxu0 0.0
        %386 = vmatpush1.msra.mxu0 %v381
        %387 = vmatprep.subr.mxu0 0.0
        %388 = vmatpush1.msra.mxu0 %v380
        %389 = vmatprep.subr.mxu0 0.0
        %390 = vmatpush1.msra.mxu0 %v379
        %391 = vmatprep.subr.mxu0 0.0
        %392 = vmatpush1.msra.mxu0 %v378
        %393 = vmatprep.subr.mxu0 0.0
        %394 = vmatpush1.msra.mxu0 %v377
        %395 = vmatprep.subr.mxu0 0.0
        %396 = vmatpush1.msra.mxu0 %v376
        %397 = vmatprep.subr.mxu0 0.0
        %398 = vmatpush1.msra.mxu0 %v375
        %399 = vmatprep.subr.mxu0 0.0
        %400 = vmatpush1.msra.mxu0 %v374
        %401 = vmatprep.subr.mxu0 0.0
        %402 = vmatpush1.msra.mxu0 %v373
        %403 = vmatprep.subr.mxu0 0.0
        %404 = vmatpush1.msra.mxu0 %v372
        %405 = vmatprep.subr.mxu0 0.0
        %406 = vmatpush1.msra.mxu0 %v371
        %407 = vmatprep.subr.mxu0 0.0
        %408 = vmatpush1.msra.mxu0 %v370
        %409 = vmatprep.subr.mxu0 0.0
        %410 = vmatpush1.msra.mxu0 %v369
        %411 = vmatprep.subr.mxu0 0.0
        %412 = vmatpush1.msra.mxu0 %v368
        %413 = vmatprep.subr.mxu0 0.0
        %414 = vmatpush1.msra.mxu0 %v367
        %415 = vmatprep.subr.mxu0 0.0
        %416 = vmatpush2.msra.mxu0 0.0
        %417 = vmatprep.subr.mxu0 0.0
        %418 = vmatpush2.msra.mxu0 0.0
        %419 = vmatprep.subr.mxu0 0.0
        %420 = vmatpush2.msra.mxu0 0.0
        %421 = vmatprep.subr.mxu0 0.0
        %422 = vmatpush2.msra.mxu0 0.0
        %423 = vmatprep.subr.mxu0 0.0
        %424 = vmatpush2.msra.mxu0 0.0
        %425 = vmatprep.subr.mxu0 0.0
        %426 = vmatpush2.msra.mxu0 0.0
        %427 = vmatprep.subr.mxu0 0.0
        %428 = vmatpush2.msra.mxu0 0.0
        %429 = vmatprep.subr.mxu0 0.0
        %430 = vmatpush2.msra.mxu0 0.0
        %431 = vmatprep.subr.mxu0 0.0
        %432 = vmatpush2.msra.mxu0 0.0
        %433 = vmatprep.subr.mxu0 0.0
        %434 = vmatpush2.msra.mxu0 0.0
        %435 = vmatprep.subr.mxu0 0.0
        %436 = vmatpush2.msra.mxu0 0.0
        %437 = vmatprep.subr.mxu0 0.0
        %438 = vmatpush2.msra.mxu0 0.0
        %439 = vmatprep.subr.mxu0 0.0
        %440 = vmatpush2.msra.mxu0 0.0
        %441 = vmatprep.subr.mxu0 0.0
        %442 = vmatpush2.msra.mxu0 0.0
        %443 = vmatprep.subr.mxu0 0.0
        %444 = vmatpush2.msra.mxu0 0.0
        %445 = vmatprep.subr.mxu0 0.0
        %446 = vmatpush2.msra.mxu0 0.0
        %447 = vmatprep.mubr.f32.mxu0 0.0
        %448 = vmatmul.mubr.f32.gmra.mxu0 %v349
        %v449 = vpop.f32.mrf.mxu0
        %v450 = vadd.f32 0.0, %v449
        %v451 = vpop.f32.mrf.mxu0
        %452 = vdwg.mxu0
        %453 = vmatprep.subr.mxu0 0.0
        %454 = vmatpush1.msra.mxu0 %v366
        %455 = vmatprep.subr.mxu0 0.0
        %456 = vmatpush1.msra.mxu0 %v365
        %457 = vmatprep.subr.mxu0 0.0
        %458 = vmatpush1.msra.mxu0 %v364
        %459 = vmatprep.subr.mxu0 0.0
        %460 = vmatpush1.msra.mxu0 %v363
        %461 = vmatprep.subr.mxu0 0.0
        %462 = vmatpush1.msra.mxu0 %v362
        %463 = vmatprep.subr.mxu0 0.0
        %464 = vmatpush1.msra.mxu0 %v361
        %465 = vmatprep.subr.mxu0 0.0
        %466 = vmatpush1.msra.mxu0 %v360
        %467 = vmatprep.subr.mxu0 0.0
        %468 = vmatpush1.msra.mxu0 %v359
        %469 = vmatprep.subr.mxu0 0.0
        %470 = vmatpush1.msra.mxu0 %v358
        %471 = vmatprep.subr.mxu0 0.0
        %472 = vmatpush1.msra.mxu0 %v357
        %473 = vmatprep.subr.mxu0 0.0
        %474 = vmatpush1.msra.mxu0 %v356
        %475 = vmatprep.subr.mxu0 0.0
        %476 = vmatpush1.msra.mxu0 %v355
        %477 = vmatprep.subr.mxu0 0.0
        %478 = vmatpush1.msra.mxu0 %v354
        %479 = vmatprep.subr.mxu0 0.0
        %480 = vmatpush1.msra.mxu0 %v353
        %481 = vmatprep.subr.mxu0 0.0
        %482 = vmatpush1.msra.mxu0 %v352
        %483 = vmatprep.subr.mxu0 0.0
        %484 = vmatpush1.msra.mxu0 %v351
        %485 = vmatprep.subr.mxu0 0.0
        %486 = vmatpush2.msra.mxu0 0.0
        %487 = vmatprep.subr.mxu0 0.0
        %488 = vmatpush2.msra.mxu0 0.0
        %489 = vmatprep.subr.mxu0 0.0
        %490 = vmatpush2.msra.mxu0 0.0
        %491 = vmatprep.subr.mxu0 0.0
        %492 = vmatpush2.msra.mxu0 0.0
        %493 = vmatprep.subr.mxu0 0.0
        %494 = vmatpush2.msra.mxu0 0.0
        %495 = vmatprep.subr.mxu0 0.0
        %496 = vmatpush2.msra.mxu0 0.0
        %497 = vmatprep.subr.mxu0 0.0
        %498 = vmatpush2.msra.mxu0 0.0
        %499 = vmatprep.subr.mxu0 0.0
        %500 = vmatpush2.msra.mxu0 0.0
        %501 = vmatprep.subr.mxu0 0.0
        %502 = vmatpush2.msra.mxu0 0.0
        %503 = vmatprep.subr.mxu0 0.0
        %504 = vmatpush2.msra.mxu0 0.0
        %505 = vmatprep.subr.mxu0 0.0
        %506 = vmatpush2.msra.mxu0 0.0
        %507 = vmatprep.subr.mxu0 0.0
        %508 = vmatpush2.msra.mxu0 0.0
        %509 = vmatprep.subr.mxu0 0.0
        %510 = vmatpush2.msra.mxu0 0.0
        %511 = vmatprep.subr.mxu0 0.0
        %512 = vmatpush2.msra.mxu0 0.0
        %513 = vmatprep.subr.mxu0 0.0
        %514 = vmatpush2.msra.mxu0 0.0
        %515 = vmatprep.subr.mxu0 0.0
        %516 = vmatpush2.msra.mxu0 0.0
        %517 = vmatprep.mubr.f32.mxu0 0.0
        %518 = vmatmul.mubr.f32.gmra.mxu0 %v350
        %v519 = vpop.f32.mrf.mxu0
        %v520 = vadd.f32 %v450, %v519
        %v521 = vpop.f32.mrf.mxu0
        %522 = vdwg.mxu0
        %v523 = vld [vmem:[%s4] sm:$0x1]
        %v525 = vlaneseq
        %v526 = vshrl.u32 %v525, 7
        %v527 = vsub.s32 0, %v526
        %v528 = vrot.slane %v523, %v527
        %v530 = vadd.f32 %v520, %v528
        %v531 = vtanh.pop %v530
        %532 = vst [vmem:[#allocation2] sm:$0xff] %v531
        %v533 = vld [vmem:[#allocation7] sm:$0xff]
        %v534 = vld [vmem:[#allocation7 + $0x8] sm:$0xff]
        %v535 = vld [vmem:[#allocation7 + $0x10] sm:$0xff]
        %v536 = vld [vmem:[#allocation7 + $0x18] sm:$0xff]
        %v537 = vld [vmem:[#allocation7 + $0x20] sm:$0xff]
        %v538 = vld [vmem:[#allocation7 + $0x28] sm:$0xff]
        %v539 = vld [vmem:[#allocation7 + $0x30] sm:$0xff]
        %v540 = vld [vmem:[#allocation7 + $0x38] sm:$0xff]
        %v541 = vld [vmem:[#allocation7 + $0x40] sm:$0xff]
        %v542 = vld [vmem:[#allocation7 + $0x48] sm:$0xff]
        %v543 = vld [vmem:[#allocation7 + $0x50] sm:$0xff]
        %v544 = vld [vmem:[#allocation7 + $0x58] sm:$0xff]
        %v545 = vld [vmem:[#allocation7 + $0x60] sm:$0xff]
        %v546 = vld [vmem:[#allocation7 + $0x68] sm:$0xff]
        %v547 = vld [vmem:[#allocation7 + $0x70] sm:$0xff]
        %v548 = vld [vmem:[#allocation7 + $0x78] sm:$0xff]
        %v549 = vld [vmem:[%s6] sm:$0x1]
        %v551 = vlaneseq
        %v552 = vshrl.u32 %v551, 7
        %v553 = vsub.s32 0, %v552
        %v554 = vrot.slane %v549, %v553
        %556 = vmatprep.subr.mxu0 0.0
        %557 = vmatpush1.msra.mxu0 %v548
        %558 = vmatprep.subr.mxu0 0.0
        %559 = vmatpush1.msra.mxu0 %v547
        %560 = vmatprep.subr.mxu0 0.0
        %561 = vmatpush1.msra.mxu0 %v546
        %562 = vmatprep.subr.mxu0 0.0
        %563 = vmatpush1.msra.mxu0 %v545
        %564 = vmatprep.subr.mxu0 0.0
        %565 = vmatpush1.msra.mxu0 %v544
        %566 = vmatprep.subr.mxu0 0.0
        %567 = vmatpush1.msra.mxu0 %v543
        %568 = vmatprep.subr.mxu0 0.0
        %569 = vmatpush1.msra.mxu0 %v542
        %570 = vmatprep.subr.mxu0 0.0
        %571 = vmatpush1.msra.mxu0 %v541
        %572 = vmatprep.subr.mxu0 0.0
        %573 = vmatpush1.msra.mxu0 %v540
        %574 = vmatprep.subr.mxu0 0.0
        %575 = vmatpush1.msra.mxu0 %v539
        %576 = vmatprep.subr.mxu0 0.0
        %577 = vmatpush1.msra.mxu0 %v538
        %578 = vmatprep.subr.mxu0 0.0
        %579 = vmatpush1.msra.mxu0 %v537
        %580 = vmatprep.subr.mxu0 0.0
        %581 = vmatpush1.msra.mxu0 %v536
        %582 = vmatprep.subr.mxu0 0.0
        %583 = vmatpush1.msra.mxu0 %v535
        %584 = vmatprep.subr.mxu0 0.0
        %585 = vmatpush1.msra.mxu0 %v534
        %586 = vmatprep.subr.mxu0 0.0
        %587 = vmatpush1.msra.mxu0 %v533
        %588 = vmatprep.subr.mxu0 0.0
        %589 = vmatpush2.msra.mxu0 0.0
        %590 = vmatprep.subr.mxu0 0.0
        %591 = vmatpush2.msra.mxu0 0.0
        %592 = vmatprep.subr.mxu0 0.0
        %593 = vmatpush2.msra.mxu0 0.0
        %594 = vmatprep.subr.mxu0 0.0
        %595 = vmatpush2.msra.mxu0 0.0
        %596 = vmatprep.subr.mxu0 0.0
        %597 = vmatpush2.msra.mxu0 0.0
        %598 = vmatprep.subr.mxu0 0.0
        %599 = vmatpush2.msra.mxu0 0.0
        %600 = vmatprep.subr.mxu0 0.0
        %601 = vmatpush2.msra.mxu0 0.0
        %602 = vmatprep.subr.mxu0 0.0
        %603 = vmatpush2.msra.mxu0 0.0
        %604 = vmatprep.subr.mxu0 0.0
        %605 = vmatpush2.msra.mxu0 0.0
        %606 = vmatprep.subr.mxu0 0.0
        %607 = vmatpush2.msra.mxu0 0.0
        %608 = vmatprep.subr.mxu0 0.0
        %609 = vmatpush2.msra.mxu0 0.0
        %610 = vmatprep.subr.mxu0 0.0
        %611 = vmatpush2.msra.mxu0 0.0
        %612 = vmatprep.subr.mxu0 0.0
        %613 = vmatpush2.msra.mxu0 0.0
        %614 = vmatprep.subr.mxu0 0.0
        %615 = vmatpush2.msra.mxu0 0.0
        %616 = vmatprep.subr.mxu0 0.0
        %617 = vmatpush2.msra.mxu0 0.0
        %618 = vmatprep.subr.mxu0 0.0
        %619 = vmatpush2.msra.mxu0 0.0
        %620 = vmatprep.mubr.f32.mxu0 0.0
        %621 = vmatmul.mubr.f32.gmra.mxu0 %v531
        %v622 = vpop.f32.mrf.mxu0
        %v623 = vadd.f32 %v554, %v622
        %v624 = vpop.f32.mrf.mxu0
        %625 = vdwg.mxu0
        %v626 = vmax.f32 %v623, 0.0
        %627 = vst [vmem:[%s342] sm:$0xff] %v626
        %628 = vst [vmem:[%s8] sm:$0xff] %v531
        %p629 = scmp.lt.s32.totalorder %s22, 7
        %s630 = scalar_select %p629, %s22, 7
        %s631 = smul.addr %s630, 8
        %s632 = scalar_lea.vmem %s7, %s631
        // Predicated region
        $region65: #{rnn_forward_seq.1} parent=47 // pred_check
          %p633 = pneg %p192
        $region66: #{rnn_forward_seq.1} parent=47 // pred_check_branch
          %635 = sbr.rel (%p633) target = $region68
        $region67: #{rnn_forward_seq.1} parent=47 // pred_region
          _
        $region68: #{rnn_forward_seq.1} parent=47 // pred_fallthru
          _
        // Predicated region
        $region69: #{rnn_forward_seq.1} parent=47 // pred_check
          %p636 = pneg %p213
        $region70: #{rnn_forward_seq.1} parent=47 // pred_check_branch
          %638 = sbr.rel (%p636) target = $region72
        $region71: #{rnn_forward_seq.1} parent=47 // pred_region
          _
        $region72: #{rnn_forward_seq.1} parent=47 // pred_fallthru
          _
        // Predicated region
        $region73: #{rnn_forward_seq.1} parent=47 // pred_check
          %p639 = pneg %p213
        $region74: #{rnn_forward_seq.1} parent=47 // pred_check_branch
          %641 = sbr.rel (%p639) target = $region76
        $region75: #{rnn_forward_seq.1} parent=47 // pred_region
          _
        $region76: #{rnn_forward_seq.1} parent=47 // pred_fallthru
          _
      $region48: #{rnn_forward_seq.1} parent=5 // pred_fallthru
        _
      %p642 = scmp.le.s32.totalorder 2, %s17
      // Predicated region
      $region77: #{rnn_forward_seq.1} parent=5 // pred_check
        %p643 = pneg %p642
      $region78: #{rnn_forward_seq.1} parent=5 // pred_check_branch
        %645 = sbr.rel (%p643) target = $region80
      $region79: #{rnn_forward_seq.1} parent=5 // pred_region
        %s646 = ssub.s32 %s17, 2
        // Predicated region
        $region81: #{rnn_forward_seq.1} parent=79 // pred_check
          %p647 = pneg %p198
        $region82: #{rnn_forward_seq.1} parent=79 // pred_check_branch
          %649 = sbr.rel (%p647) target = $region84
        $region83: #{rnn_forward_seq.1} parent=79 // pred_region
          %p650 = scmp.lt.s32.totalorder %s23, 7
          %s651 = scalar_select %p650, %s23, 7
          %s652 = smul.addr %s651, 8
          %s653 = scalar_lea.vmem %s7, %s652
        $region84: #{rnn_forward_seq.1} parent=79 // pred_fallthru
          _
      $region80: #{rnn_forward_seq.1} parent=5 // pred_fallthru
        _
    $region6: #{rnn_forward_seq.1} parent=1 // loop_footer
      %s21 = sadd.s32 1, %s17
    $region7: #{rnn_forward_seq.1} parent=1 // loop_footer_branch
      %16 = sbr.rel target = $region3
    $region8: #{rnn_forward_seq.1} parent=1 // loop_exit
      _
    %654 = vsyncpa [#allocation4], 1
    %s655 = scalar_lea.sflag [#allocation4], 1
    %656 = vsyncpa %s655, 1
    %657 = vsyncpa [#allocation6], 1

</llo_original>
